<compile_context>
chip_gen: v6e
topology: v6e:2x2x1
jax: 0.10.0
libtpu: 0.0.40
codegen_flags: <defaults>
</compile_context>

<pallas_src>
import jax
import jax.numpy as jnp
from jax import lax
from jax.experimental import pallas as pl
from jax.experimental.pallas import tpu as pltpu

H1, H2, H3 = 32, 16, 1  # hidden sizes from the module definition


def _round_up(n, m):
    return ((n + m - 1) // m) * m


def _mlp_kernel(x_ref, w1t_ref, b1t_ref, w23t_ref, b23_ref, o_ref):
    # Cast the tile to bf16 in-kernel (VPU has slack; avoids a wrapper-side
    # HBM round trip of the whole batch).
    xb = x_ref[...].astype(w1t_ref.dtype)                          # (block_b, D)

    # fc1, batch-on-lanes orientation:
    #   (H1, D) . (block_b, D)^T -> (H1, block_b)   (f32 accumulation on MXU)
    # h is lane-dense since block_b is a multiple of 128.
    h = lax.dot_general(
        w1t_ref[...], xb,
        dimension_numbers=(((1,), (1,)), ((), ())),
        preferred_element_type=jnp.float32,
    )
    h = jnp.maximum(h + b1t_ref[...], 0.0)                         # bias + ReLU (f32 VPU)

    # dropout(p=0.6): identity in eval/inference mode
    # TODO(synk): training-mode dropout (pltpu.prng_seed + prng_random_bits
    #             Bernoulli mask with 1/(1-p) scaling) not emitted.

    # fused fc2+fc3 (no nonlinearity between them in eval mode):
    #   (1, H1) . (H1, block_b) -> (1, block_b), lane-dense
    y = jnp.dot(w23t_ref[...], h.astype(w23t_ref.dtype),
                preferred_element_type=jnp.float32)
    y = jax.nn.sigmoid(y + b23_ref[0, 0])                          # scalar bias from SMEM

    # lane-dense unmasked store: out block is (1, 1, block_b)
    o_ref[...] = y.reshape(1, 1, -1)


def network_forward(x, params, *, block_b=None, compute_dtype=jnp.bfloat16):
    """Forward pass of the MLP (eval mode) as a single Pallas kernel.

    x: [B, input_dim] float32
    params: dict with w1 [D,32], b1 [1,32], w2 [32,16], b2 [1,16],
            w3 [16,1], b3 [1,1]   (torch-layout-transposed)
    returns: [B, 1] float32 (sigmoid output)
    """
    B, D = x.shape
    x_itemsize = x.dtype.itemsize
    Dp = _round_up(D, 128)                 # lane-padded width of an x tile in VMEM

    # ---- batch tiling -------------------------------------------------------
    TARGET_TILE_BYTES = 4 << 20            # ~4 MiB of x HBM traffic per grid step
    X_VMEM_BUDGET = 24 << 20               # both pipeline buffers of x (v7x-safe)
    if block_b is None:
        rows_target = max(128, (TARGET_TILE_BYTES // (D * x_itemsize)) // 128 * 128)
        rows_vmem = max(128, (X_VMEM_BUDGET // (2 * Dp * x_itemsize)) // 128 * 128)
        # keep >= 2 batch tiles when B allows it so the (parallel) tile axis can
        # shard across the 2 TensorCores on v7x
        rows_two = _round_up((_round_up(B, 128) + 1) // 2, 128)
        block_b = max(128, min(rows_target, rows_vmem, rows_two))
    assert block_b % 128 == 0, "block_b must be a multiple of 128 (lane-dense tiles)"
    num_tiles = pl.cdiv(B, block_b)        # ragged last tile handled by Pallas, no pad copy
    # TODO(synk): for extremely wide feature dims (D > ~24k) a K-tiling grid axis
    #             with an f32 accumulator scratch would keep block_b large; not
    #             needed for this module's realistic input_dim.

    # ---- wrapper-side param prep (tiny, batch-independent) ------------------
    w23 = params["w2"] @ params["w3"]                      # (H1, 1) f32  (fc2 @ fc3)
    b23 = params["b2"] @ params["w3"] + params["b3"]       # (1, 1)  f32
    w1t = params["w1"].T.astype(compute_dtype)             # (H1, D)
    w23t = w23.T.astype(compute_dtype)                     # (1, H1)
    b1t = params["b1"].reshape(H1, 1).astype(jnp.float32)  # (H1, 1)
    b23 = b23.astype(jnp.float32)                          # (1, 1) -> SMEM scalar

    # ---- VMEM budget / cost estimate ----------------------------------------
    w_vmem = H1 * Dp * 2 + H1 * 4 + _round_up(H1, 128) * 2            # padded weights
    temps = block_b * Dp * 2 + block_b * H1 * 6 + block_b * 16        # xb, h f32+bf16, y
    vmem_needed = (2 * block_b * Dp * x_itemsize      # double-buffered x tiles
                   + 2 * block_b * 4                  # double-buffered out tiles
                   + 2 * w_vmem + temps)
    vmem_limit = int(min(max(vmem_needed + (8 << 20), 32 << 20), 56 << 20))

    cost = pl.CostEstimate(
        flops=2 * B * (D * H1 + H1 * H3),
        transcendentals=B,
        bytes_accessed=B * D * x_itemsize + B * 4 + (H1 * D + 2 * H1 + 1) * 4,
    )

    const2d = lambda shape: pl.BlockSpec(shape, lambda i: (0, 0))
    # NOTE: the constant-index weight blocks could be single-buffered
    # (pipeline_mode=pl.Buffered(1)) to save VMEM for very wide D; they are tiny
    # here, so default buffering is kept for maximum portability.

    out3 = pl.pallas_call(
        _mlp_kernel,
        out_shape=jax.ShapeDtypeStruct((num_tiles, 1, block_b), jnp.float32),
        grid_spec=pltpu.PrefetchScalarGridSpec(
            num_scalar_prefetch=0,
            grid=(num_tiles,),
            in_specs=[
                pl.BlockSpec((block_b, D), lambda i: (i, 0)),        # x tile (native dtype)
                const2d((H1, D)),                                    # w1^T
                const2d((H1, 1)),                                    # b1^T
                const2d((1, H1)),                                    # (w2 @ w3)^T
                pl.BlockSpec(memory_space=pltpu.MemorySpace.SMEM),   # fused scalar bias
            ],
            out_specs=pl.BlockSpec((1, 1, block_b), lambda i: (i, 0, 0)),
        ),
        compiler_params=pltpu.CompilerParams(
            dimension_semantics=("parallel",),
            vmem_limit_bytes=vmem_limit,
        ),
        cost_estimate=cost,
    )(x, w1t, b1t, w23t, b23)

    # (num_tiles, 1, block_b) -> (B, 1); padded tail lanes (if any) are dropped
    return out3.reshape(num_tiles * block_b)[:B].reshape(B, 1)


def init_params(key, input_dim):
    """Deterministic init mimicking torch.nn.Linear default (uniform +-1/sqrt(fan_in))."""
    ks = jax.random.split(key, 6)

    def lin(kw, kb, fan_in, fan_out):
        bound = 1.0 / jnp.sqrt(fan_in)
        w = jax.random.uniform(kw, (fan_in, fan_out), jnp.float32, -bound, bound)
        b = jax.random.uniform(kb, (1, fan_out), jnp.float32, -bound, bound)
        return w, b

    w1, b1 = lin(ks[0], ks[1], input_dim, H1)
    w2, b2 = lin(ks[2], ks[3], H1, H2)
    w3, b3 = lin(ks[4], ks[5], H2, H3)
    return {"w1": w1, "b1": b1, "w2": w2, "b2": b2, "w3": w3, "b3": b3}


if __name__ == "__main__":
    key = jax.random.PRNGKey(0)
    k_x, k_p = jax.random.split(key)

    # small synthetic bag of instance features; batch chosen so the kernel
    # exercises multiple batch tiles and a ragged last tile
    batch, input_dim = 200, 64
    x = jax.random.normal(k_x, (batch, input_dim), dtype=jnp.float32)
    params = init_params(k_p, input_dim)

    out = network_forward(x, params)
    out = jax.block_until_ready(out)
    assert out.shape == (batch, 1)
    assert bool(jnp.all(jnp.isfinite(out)))

    # Reference 1: pure-JAX emulation of the kernel's exact math (bf16 matmul
    # inputs, f32 accumulation, fused fc2+fc3) -> tight tolerance.
    xb = x.astype(jnp.bfloat16)
    w1b = params["w1"].astype(jnp.bfloat16)
    h = jnp.dot(xb, w1b, preferred_element_type=jnp.float32) + params["b1"]
    h = jnp.maximum(h, 0.0)
    w23 = params["w2"] @ params["w3"]
    b23 = params["b2"] @ params["w3"] + params["b3"]
    y = jnp.dot(h.astype(jnp.bfloat16), w23.astype(jnp.bfloat16),
                preferred_element_type=jnp.float32) + b23
    ref_bf16 = jax.nn.sigmoid(y)
    assert jnp.allclose(out, ref_bf16, atol=1e-4, rtol=1e-4), "mismatch vs bf16 reference"

    # Reference 2: full-f32 torch-equivalent forward (eval mode) -> loose tolerance
    # (bf16 matmul inputs introduce small, bounded error on the sigmoid output).
    hf = jnp.maximum(x @ params["w1"] + params["b1"], 0.0)
    hf = hf @ params["w2"] + params["b2"]
    ref_f32 = jax.nn.sigmoid(hf @ params["w3"] + params["b3"])
    assert jnp.allclose(out, ref_f32, atol=3e-2), "mismatch vs f32 reference"

    print("KERNEL_OK")
</pallas_src>

<mosaic_0001>
module attributes {stable_mosaic.version = 11 : i64} {
  func.func @_mlp_kernel(%arg0: i32, %arg1: memref<128x64xf32, #tpu.memory_space<vmem>>, %arg2: memref<32x64xbf16, #tpu.memory_space<vmem>>, %arg3: memref<32x1xf32, #tpu.memory_space<vmem>>, %arg4: memref<1x32xbf16, #tpu.memory_space<vmem>>, %arg5: memref<1x1xf32, #tpu.memory_space<smem>>, %arg6: memref<1x1x128xf32, #tpu.memory_space<vmem>>) attributes {dimension_semantics = [#tpu.dimension_semantics<parallel>], iteration_bounds = array<i64: 2>, scalar_prefetch = 0 : i64, scratch_operands = 0 : i64, tpu.core_type = #tpu.core_type<tc>, window_params = [{transform_indices = @transform_0, window_bounds = array<i64: 128, 64>}, {pipeline_mode = #tpu.pipeline_mode<synchronous>, transform_indices = @transform_1, window_bounds = array<i64: 32, 64>}, {pipeline_mode = #tpu.pipeline_mode<synchronous>, transform_indices = @transform_2, window_bounds = array<i64: 32, 1>}, {pipeline_mode = #tpu.pipeline_mode<synchronous>, transform_indices = @transform_3, window_bounds = array<i64: 1, 32>}, {transform_indices = @transform_4, window_bounds = array<i64: 1, 1>}, {transform_indices = @transform_5, window_bounds = array<i64: 1, 1, 128>}]} {
    %c0 = arith.constant 0 : index
    %c0_0 = arith.constant 0 : index
    %0 = vector.load %arg1[%c0, %c0_0] : memref<128x64xf32, #tpu.memory_space<vmem>>, vector<128x64xf32>
    %1 = arith.truncf %0 : vector<128x64xf32> to vector<128x64xbf16>
    %c0_1 = arith.constant 0 : index
    %c0_2 = arith.constant 0 : index
    %2 = vector.load %arg2[%c0_1, %c0_2] : memref<32x64xbf16, #tpu.memory_space<vmem>>, vector<32x64xbf16>
    %cst = arith.constant dense<0.000000e+00> : vector<32x128xf32>
    %3 = tpu.matmul %2, %1, %cst {dimension_numbers = #tpu.dot_dimension_numbers<[1], [1], [0], [0], [0, 0, 1, 0], [], []>} : vector<32x64xbf16>, vector<128x64xbf16>, vector<32x128xf32> -> vector<32x128xf32>
    %c0_3 = arith.constant 0 : index
    %c0_4 = arith.constant 0 : index
    %4 = vector.load %arg3[%c0_3, %c0_4] : memref<32x1xf32, #tpu.memory_space<vmem>>, vector<32x1xf32>
    %5 = vector.broadcast %4 : vector<32x1xf32> to vector<32x128xf32>
    %6 = arith.addf %3, %5 : vector<32x128xf32>
    %cst_5 = arith.constant 0.000000e+00 : f32
    %7 = vector.broadcast %cst_5 : f32 to vector<32x128xf32>
    %8 = arith.maximumf %6, %7 : vector<32x128xf32>
    %c0_6 = arith.constant 0 : index
    %c0_7 = arith.constant 0 : index
    %9 = vector.load %arg4[%c0_6, %c0_7] : memref<1x32xbf16, #tpu.memory_space<vmem>>, vector<1x32xbf16>
    %10 = arith.truncf %8 : vector<32x128xf32> to vector<32x128xbf16>
    %cst_8 = arith.constant dense<0.000000e+00> : vector<1x128xf32>
    %11 = tpu.matmul %9, %10, %cst_8 {dimension_numbers = #tpu.dot_dimension_numbers<[1], [0], [0], [1], [0, 0, 1, 1], [], []>} : vector<1x32xbf16>, vector<32x128xbf16>, vector<1x128xf32> -> vector<1x128xf32>
    %c0_9 = arith.constant 0 : index
    %c0_10 = arith.constant 0 : index
    %12 = memref.load %arg5[%c0_9, %c0_10] : memref<1x1xf32, #tpu.memory_space<smem>>
    %13 = vector.broadcast %12 : f32 to vector<1x128xf32>
    %14 = arith.addf %11, %13 : vector<1x128xf32>
    %15 = arith.negf %14 : vector<1x128xf32>
    %16 = math.exp %15 : vector<1x128xf32>
    %cst_11 = arith.constant 1.000000e+00 : f32
    %17 = vector.broadcast %cst_11 : f32 to vector<1x128xf32>
    %18 = arith.addf %17, %16 : vector<1x128xf32>
    %19 = arith.divf %17, %18 : vector<1x128xf32>
    %20 = vector.shape_cast %19 : vector<1x128xf32> to vector<1x1x128xf32>
    %c0_12 = arith.constant 0 : index
    %c0_13 = arith.constant 0 : index
    %c0_14 = arith.constant 0 : index
    %21 = vector.load %arg6[%c0_12, %c0_13, %c0_14] : memref<1x1x128xf32, #tpu.memory_space<vmem>>, vector<1x1x128xf32>
    tpu.vector_store %arg6[%c0_12, %c0_13, %c0_14], %20 {strides = array<i32>} : memref<1x1x128xf32, #tpu.memory_space<vmem>>, vector<1x1x128xf32>,
    return
  }
  func.func @transform_0(%arg0: i32) -> (i32, i32) {
    %c0_i32 = arith.constant 0 : i32
    %c0_i32_0 = arith.constant 0 : i32
    return %arg0, %c0_i32 : i32, i32
  }
  func.func @transform_1(%arg0: i32) -> (i32, i32) {
    %c0_i32 = arith.constant 0 : i32
    %c0_i32_0 = arith.constant 0 : i32
    %c0_i32_1 = arith.constant 0 : i32
    return %c0_i32, %c0_i32_0 : i32, i32
  }
  func.func @transform_2(%arg0: i32) -> (i32, i32) {
    %c0_i32 = arith.constant 0 : i32
    %c0_i32_0 = arith.constant 0 : i32
    %c0_i32_1 = arith.constant 0 : i32
    return %c0_i32, %c0_i32_0 : i32, i32
  }
  func.func @transform_3(%arg0: i32) -> (i32, i32) {
    %c0_i32 = arith.constant 0 : i32
    %c0_i32_0 = arith.constant 0 : i32
    %c0_i32_1 = arith.constant 0 : i32
    return %c0_i32, %c0_i32_0 : i32, i32
  }
  func.func @transform_4(%arg0: i32) -> (i32, i32) {
    %c0_i32 = arith.constant 0 : i32
    %c0_i32_0 = arith.constant 0 : i32
    %c0_i32_1 = arith.constant 0 : i32
    return %c0_i32, %c0_i32_0 : i32, i32
  }
  func.func @transform_5(%arg0: i32) -> (i32, i32, i32) {
    %c0_i32 = arith.constant 0 : i32
    %c0_i32_0 = arith.constant 0 : i32
    %c0_i32_1 = arith.constant 0 : i32
    return %arg0, %c0_i32, %c0_i32_0 : i32, i32, i32
  }
}

</mosaic_0001>

<llo_original>
// kernel: tpu_custom_call.1
$region0: #{tpu_custom_call.1}
  #allocation0 [shape = 'u32[]', space=smem, size = 0x4, offset = 0x4, fixed_abs, tag = 'smem constant byte address 0x4 - core index']
  #allocation1 [shape = 'u32[144,128]{1,0:T(1,128)}', space=vmem, size = 0x12000, scoped, tag = 'internal scratch']
  #allocation2 [shape = 'f32[1,1]{1,0:T(1,128)S(6)}', space=smem, size = 0x200, scoped, tag = 'scoped memory for tpu_custom_call.1']
  %s0 = inlined_call_operand.vmem [shape: f32[200,64], index: 0, kind: input, shape index: {}]
  %s1 = inlined_call_operand.vmem [shape: bf16[32,64], index: 1, kind: input, shape index: {}]
  %s2 = inlined_call_operand.vmem [shape: f32[32,1], index: 2, kind: input, shape index: {}]
  %s3 = inlined_call_operand.vmem [shape: bf16[1,32], index: 3, kind: input, shape index: {}]
  %s4 = inlined_call_operand.<no memory space> [shape: f32[1,1], index: 4, kind: input, shape index: {}]
  %s5 = inlined_call_operand.hbm [shape: f32[2,1,128], index: 5, kind: output, shape index: {}]
  %s6 = sld [smem:[#allocation0]]
  $region53: #{tpu_custom_call.1} parent=0
    _
  %s8 = ssub.s32 1, %s6
  %s9 = scalar_select 0, %s8, %s6
  %10 = sst [smem:[#allocation2]] %s4
  $region1: #{tpu_custom_call.1} parent=0
    #allocation3 [shape = 'u8[1024]{0}', space=vmem, size = 0x400, scoped, tag = 'output window, operand 0']
    #allocation4 [shape = 's32[2]{0}', space=sflag, size = 0x8, scoped, tag = 'scoped memory for tpu_custom_call.1']
    %11 = vsyncpa [#allocation4], 0
    %s12 = scalar_lea.sflag [#allocation4], 1
    %13 = vsyncpa %s12, 0
    loop: start=0, step=1, limit=4
    $region2: #{tpu_custom_call.1} parent=1 // loop_pre_header
      _
    $region3: #{tpu_custom_call.1} parent=1 // loop_header
      %s15 = sphi 0, %s19
      %p16 = scmp.ge.s32.totalorder %s15, 4
      %s25 = sphi 0, %s27
      %s28 = sphi 0, %s25
      %s29 = sphi 0, %s28
      %s45 = sphi 0, %s29
      %s49 = sphi 0, %s49
      %s51 = sphi 0, %s49
      %s52 = sphi 0, %s51
      %s66 = sphi 0, %s52
      %s70 = sphi 0, %s70
      %s72 = sphi 0, %s70
      %s73 = sphi 0, %s72
      %s87 = sphi 0, %s73
      %s91 = sphi 0, %s91
      %s93 = sphi 0, %s91
      %s94 = sphi 0, %s93
      %s108 = sphi 0, %s94
      %s112 = sphi 0, %s112
      %s114 = sphi 0, %s112
      %s115 = sphi 0, %s114
      %s129 = sphi 0, %s115
      %s135 = sphi 0, %s137
      %s138 = sphi 0, %s135
      %s139 = sphi 0, %s138
      %s155 = sphi 0, %s139
    $region4: #{tpu_custom_call.1} parent=1 // loop_header_branch
      %18 = sbr.rel (%p16) target = $region8
    $region5: #{tpu_custom_call.1} parent=1 // loop_body
      %s20 = ssub.s32 %s15, 1
      %s21 = ssub.s32 %s15, 2
      %s22 = sadd.s32 %s15, 1
      %s23 = ssub.s32 %s15, %s22
      %p24 = scmp.eq.s32.totalorder %s23, 0
      %s26 = sadd.s32 %s25, 1
      %s27 = scalar_select %p24, %s25, %s26
      %p30 = pneg %p24
      %p31 = scmp.eq.s32.totalorder %s15, 1
      %p32 = por %p30, %p31
      %p33 = scmp.ne.s32.totalorder %s25, %s28
      %p34 = scmp.eq.s32.totalorder %s15, 0
      %p35 = por %p33, %p34
      %p36 = scmp.ne.s32.totalorder %s25, %s28
      %p37 = scmp.eq.s32.totalorder %s20, 1
      %p38 = por %p36, %p37
      %p39 = scmp.ne.s32.totalorder %s28, %s29
      %p40 = scmp.eq.s32.totalorder %s20, 0
      %p41 = por %p39, %p40
      %p42 = scmp.ne.s32.totalorder %s28, %s29
      %p43 = scmp.eq.s32.totalorder %s21, 1
      %p44 = por %p42, %p43
      %p46 = scmp.ne.s32.totalorder %s29, %s45
      %p47 = scmp.eq.s32.totalorder %s21, 0
      %p48 = por %p46, %p47
      %s50 = sadd.s32 %s49, 1
      %p53 = scmp.eq.s32.totalorder %s15, 1
      %p54 = scmp.ne.s32.totalorder %s49, %s51
      %p55 = scmp.eq.s32.totalorder %s15, 0
      %p56 = por %p54, %p55
      %p57 = scmp.ne.s32.totalorder %s49, %s51
      %p58 = scmp.eq.s32.totalorder %s20, 1
      %p59 = por %p57, %p58
      %p60 = scmp.ne.s32.totalorder %s51, %s52
      %p61 = scmp.eq.s32.totalorder %s20, 0
      %p62 = por %p60, %p61
      %p63 = scmp.ne.s32.totalorder %s51, %s52
      %p64 = scmp.eq.s32.totalorder %s21, 1
      %p65 = por %p63, %p64
      %p67 = scmp.ne.s32.totalorder %s52, %s66
      %p68 = scmp.eq.s32.totalorder %s21, 0
      %p69 = por %p67, %p68
      %s71 = sadd.s32 %s70, 1
      %p74 = scmp.eq.s32.totalorder %s15, 1
      %p75 = scmp.ne.s32.totalorder %s70, %s72
      %p76 = scmp.eq.s32.totalorder %s15, 0
      %p77 = por %p75, %p76
      %p78 = scmp.ne.s32.totalorder %s70, %s72
      %p79 = scmp.eq.s32.totalorder %s20, 1
      %p80 = por %p78, %p79
      %p81 = scmp.ne.s32.totalorder %s72, %s73
      %p82 = scmp.eq.s32.totalorder %s20, 0
      %p83 = por %p81, %p82
      %p84 = scmp.ne.s32.totalorder %s72, %s73
      %p85 = scmp.eq.s32.totalorder %s21, 1
      %p86 = por %p84, %p85
      %p88 = scmp.ne.s32.totalorder %s73, %s87
      %p89 = scmp.eq.s32.totalorder %s21, 0
      %p90 = por %p88, %p89
      %s92 = sadd.s32 %s91, 1
      %p95 = scmp.eq.s32.totalorder %s15, 1
      %p96 = scmp.ne.s32.totalorder %s91, %s93
      %p97 = scmp.eq.s32.totalorder %s15, 0
      %p98 = por %p96, %p97
      %p99 = scmp.ne.s32.totalorder %s91, %s93
      %p100 = scmp.eq.s32.totalorder %s20, 1
      %p101 = por %p99, %p100
      %p102 = scmp.ne.s32.totalorder %s93, %s94
      %p103 = scmp.eq.s32.totalorder %s20, 0
      %p104 = por %p102, %p103
      %p105 = scmp.ne.s32.totalorder %s93, %s94
      %p106 = scmp.eq.s32.totalorder %s21, 1
      %p107 = por %p105, %p106
      %p109 = scmp.ne.s32.totalorder %s94, %s108
      %p110 = scmp.eq.s32.totalorder %s21, 0
      %p111 = por %p109, %p110
      %s113 = sadd.s32 %s112, 1
      %p116 = scmp.eq.s32.totalorder %s15, 1
      %p117 = scmp.ne.s32.totalorder %s112, %s114
      %p118 = scmp.eq.s32.totalorder %s15, 0
      %p119 = por %p117, %p118
      %p120 = scmp.ne.s32.totalorder %s112, %s114
      %p121 = scmp.eq.s32.totalorder %s20, 1
      %p122 = por %p120, %p121
      %p123 = scmp.ne.s32.totalorder %s114, %s115
      %p124 = scmp.eq.s32.totalorder %s20, 0
      %p125 = por %p123, %p124
      %p126 = scmp.ne.s32.totalorder %s114, %s115
      %p127 = scmp.eq.s32.totalorder %s21, 1
      %p128 = por %p126, %p127
      %p130 = scmp.ne.s32.totalorder %s115, %s129
      %p131 = scmp.eq.s32.totalorder %s21, 0
      %p132 = por %p130, %p131
      %s133 = ssub.s32 %s15, %s22
      %p134 = scmp.eq.s32.totalorder %s133, 0
      %s136 = sadd.s32 %s135, 1
      %s137 = scalar_select %p134, %s135, %s136
      %p140 = pneg %p134
      %p141 = scmp.eq.s32.totalorder %s15, 1
      %p142 = por %p140, %p141
      %p143 = scmp.ne.s32.totalorder %s135, %s138
      %p144 = scmp.eq.s32.totalorder %s15, 0
      %p145 = por %p143, %p144
      %p146 = scmp.ne.s32.totalorder %s135, %s138
      %p147 = scmp.eq.s32.totalorder %s20, 1
      %p148 = por %p146, %p147
      %p149 = scmp.ne.s32.totalorder %s138, %s139
      %p150 = scmp.eq.s32.totalorder %s20, 0
      %p151 = por %p149, %p150
      %p152 = scmp.ne.s32.totalorder %s138, %s139
      %p153 = scmp.eq.s32.totalorder %s21, 1
      %p154 = por %p152, %p153
      %p156 = scmp.ne.s32.totalorder %s139, %s155
      %p157 = scmp.eq.s32.totalorder %s21, 0
      %p158 = por %p156, %p157
      %p159 = scmp.le.s32.totalorder 1, %s15
      %p160 = scmp.lt.s32.totalorder %s15, 3
      %p161 = pnand %p159, %p160
      %p162 = pneg %p161
      // Predicated region
      $region9: #{tpu_custom_call.1} parent=5 // pred_check
        _
      $region10: #{tpu_custom_call.1} parent=5 // pred_check_branch
        %164 = sbr.rel (%p161) target = $region12
      $region11: #{tpu_custom_call.1} parent=5 // pred_region
        %s165 = ssub.s32 %s15, 1
        // Predicated region
        $region13: #{tpu_custom_call.1} parent=11 // pred_check
          %p166 = pneg %p62
        $region14: #{tpu_custom_call.1} parent=11 // pred_check_branch
          %168 = sbr.rel (%p166) target = $region16
        $region15: #{tpu_custom_call.1} parent=11 // pred_region
          _
        $region16: #{tpu_custom_call.1} parent=11 // pred_fallthru
          _
        // Predicated region
        $region17: #{tpu_custom_call.1} parent=11 // pred_check
          %p169 = pneg %p83
        $region18: #{tpu_custom_call.1} parent=11 // pred_check_branch
          %171 = sbr.rel (%p169) target = $region20
        $region19: #{tpu_custom_call.1} parent=11 // pred_region
          _
        $region20: #{tpu_custom_call.1} parent=11 // pred_fallthru
          _
        // Predicated region
        $region21: #{tpu_custom_call.1} parent=11 // pred_check
          %p172 = pneg %p104
        $region22: #{tpu_custom_call.1} parent=11 // pred_check_branch
          %174 = sbr.rel (%p172) target = $region24
        $region23: #{tpu_custom_call.1} parent=11 // pred_region
          _
        $region24: #{tpu_custom_call.1} parent=11 // pred_fallthru
          _
        // Predicated region
        $region25: #{tpu_custom_call.1} parent=11 // pred_check
          %p175 = pneg %p125
        $region26: #{tpu_custom_call.1} parent=11 // pred_check_branch
          %177 = sbr.rel (%p175) target = $region28
        $region27: #{tpu_custom_call.1} parent=11 // pred_region
          _
        $region28: #{tpu_custom_call.1} parent=11 // pred_fallthru
          _
      $region12: #{tpu_custom_call.1} parent=5 // pred_fallthru
        _
      %p178 = scmp.lt.s32.totalorder %s15, 2
      // Predicated region
      $region29: #{tpu_custom_call.1} parent=5 // pred_check
        %p179 = pneg %p178
      $region30: #{tpu_custom_call.1} parent=5 // pred_check_branch
        %181 = sbr.rel (%p179) target = $region32
      $region31: #{tpu_custom_call.1} parent=5 // pred_region
        // Predicated region
        $region33: #{tpu_custom_call.1} parent=31 // pred_check
          %p182 = pneg %p35
        $region34: #{tpu_custom_call.1} parent=31 // pred_check_branch
          %184 = sbr.rel (%p182) target = $region36
        $region35: #{tpu_custom_call.1} parent=31 // pred_region
          %s185 = smul.u32 16, %s15
          %s186 = ssub.s32 25, %s185
          %p187 = scmp.lt.s32.totalorder %s186, 16
          %s188 = scalar_select %p187, %s186, 16
          %s189 = smul.u32 128, %s188
          %p190 = scmp.lt.s32.totalorder %s185, 24
          %s191 = scalar_select %p190, %s185, 24
          %s192 = smul.addr %s191, 8
          %s193 = scalar_lea.vmem %s0, %s192
          %s194 = smul.u32 16, %s15
          %s195 = ssub.s32 25, %s194
          %p196 = scmp.lt.s32.totalorder %s195, 16
          %s197 = scalar_select %p196, %s195, 16
          %s198 = smul.u32 128, %s197
        $region36: #{tpu_custom_call.1} parent=31 // pred_fallthru
          _
      $region32: #{tpu_custom_call.1} parent=5 // pred_fallthru
        _
      %p199 = scmp.le.s32.totalorder 1, %s15
      %p200 = scmp.lt.s32.totalorder %s15, 3
      %p201 = pnand %p199, %p200
      %p202 = pneg %p201
      // Predicated region
      $region37: #{tpu_custom_call.1} parent=5 // pred_check
        _
      $region38: #{tpu_custom_call.1} parent=5 // pred_check_branch
        %204 = sbr.rel (%p201) target = $region40
      $region39: #{tpu_custom_call.1} parent=5 // pred_region
        %s205 = ssub.s32 %s15, 1
        %s206 = smul.u32 16, %s20
        %s207 = ssub.s32 25, %s206
        %p208 = scmp.lt.s32.totalorder %s207, 16
        %s209 = scalar_select %p208, %s207, 16
        %s210 = smul.u32 128, %s209
        %p211 = scmp.lt.s32.totalorder %s206, 24
        %s212 = scalar_select %p211, %s206, 24
        %s213 = smul.addr %s212, 8
        %s214 = scalar_lea.vmem %s0, %s213
        %p215 = pneg %p41
        %p216 = pneg %p38
        %p217 = pneg %p62
        %p218 = pneg %p59
        %p219 = pneg %p83
        %p220 = pneg %p80
        %p221 = pneg %p104
        %p222 = pneg %p101
        %p223 = pneg %p125
        %p224 = pneg %p122
        %p225 = pneg %p151
        %p226 = pneg %p148
        %s227 = sand.u32 %s138, 1
        %s228 = scalar_lea.sflag [#allocation4], %s227
        %s229 = sand.u32 %s138, 1
        %s230 = scalar_lea.vmem [#allocation3], %s229
        %s231 = smul.u32 16, %s20
        %s232 = ssub.s32 25, %s231
        %p233 = scmp.lt.s32.totalorder %s232, 16
        %s234 = scalar_select %p233, %s232, 16
        %s235 = smul.u32 128, %s234
        %p236 = scmp.lt.s32.totalorder %s231, 24
        %s237 = scalar_select %p236, %s231, 24
        %s238 = smul.addr %s237, 8
        %s239 = scalar_lea.vmem %s0, %s238
        %s240 = smul.u32 16, %s20
        %s241 = ssub.s32 25, %s240
        %p242 = scmp.lt.s32.totalorder %s241, 16
        %s243 = scalar_select %p242, %s241, 16
        %s244 = smul.u32 128, %s243
        %v246 = vld [vmem:[%s239] sm:$0xff]
        %v247 = vld [vmem:[%s239 + $0x8] sm:$0xff]
        %v248 = vld [vmem:[%s239 + $0x10] sm:$0xff]
        %v249 = vld [vmem:[%s239 + $0x18] sm:$0xff]
        %v250 = vld [vmem:[%s239 + $0x20] sm:$0xff]
        %v251 = vld [vmem:[%s239 + $0x28] sm:$0xff]
        %v252 = vld [vmem:[%s239 + $0x30] sm:$0xff]
        %v253 = vld [vmem:[%s239 + $0x38] sm:$0xff]
        %v254 = vld [vmem:[%s239 + $0x40] sm:$0xff]
        %v255 = vld [vmem:[%s239 + $0x48] sm:$0xff]
        %v256 = vld [vmem:[%s239 + $0x50] sm:$0xff]
        %v257 = vld [vmem:[%s239 + $0x58] sm:$0xff]
        %v258 = vld [vmem:[%s239 + $0x60] sm:$0xff]
        %v259 = vld [vmem:[%s239 + $0x68] sm:$0xff]
        %v260 = vld [vmem:[%s239 + $0x70] sm:$0xff]
        %v261 = vld [vmem:[%s239 + $0x78] sm:$0xff]
        %v262 = vpack.c.bf16 %v247, %v246
        %v263 = vpack.c.bf16 %v249, %v248
        %v264 = vpack.c.bf16 %v251, %v250
        %v265 = vpack.c.bf16 %v253, %v252
        %v266 = vpack.c.bf16 %v255, %v254
        %v267 = vpack.c.bf16 %v257, %v256
        %v268 = vpack.c.bf16 %v259, %v258
        %v269 = vpack.c.bf16 %v261, %v260
        %v270 = vld [vmem:[%s1] sm:$0xf]
        %v271 = vld [vmem:[%s1 + $0x4] sm:$0xf]
        %v272 = vld [vmem:[%s1 + $0x8] sm:$0xf]
        %v273 = vld [vmem:[%s1 + $0xc] sm:$0xf]
        %v274 = vld [vmem:[%s2] sm:$0xff]
        %v275 = vld [vmem:[%s2 + $0x8] sm:$0xff]
        %v276 = vld [vmem:[%s2 + $0x10] sm:$0xff]
        %v277 = vld [vmem:[%s2 + $0x18] sm:$0xff]
        %279 = vset.pattern.permute.xlu0 0
        %280 = vperm.xlu0 %279, %v274
        %v281 = vpop.permute.xlu0 %280
        %284 = vset.pattern.permute.xlu0 0
        %285 = vperm.xlu0 %284, %v275
        %v286 = vpop.permute.xlu0 %285
        %289 = vset.pattern.permute.xlu0 0
        %290 = vperm.xlu0 %289, %v276
        %v291 = vpop.permute.xlu0 %290
        %294 = vset.pattern.permute.xlu0 0
        %295 = vperm.xlu0 %294, %v277
        %v296 = vpop.permute.xlu0 %295
        %v302 = vunpack.c.l.b16 %v270
        %v303 = vunpack.c.l.b16 %v271
        %v304 = vunpack.c.l.b16 %v272
        %v305 = vunpack.c.l.b16 %v273
        %v306 = vpack.c.b16 %v303, %v302
        %v307 = vpack.c.b16 %v305, %v304
        %vm308 = vcmask 523264
        %v310 = vsel %vm308, %v306, 0
        %v313 = vsel %vm308, %v307, 0
        %v316 = vsel %vm308, %v262, 0
        %v319 = vsel %vm308, %v263, 0
        %v322 = vsel %vm308, %v264, 0
        %v325 = vsel %vm308, %v265, 0
        %v328 = vsel %vm308, %v266, 0
        %v331 = vsel %vm308, %v267, 0
        %v334 = vsel %vm308, %v268, 0
        %v337 = vsel %vm308, %v269, 0
        %339 = vmatprep.subr.bf16.mxu0 0
        %340 = vmatpush1.bf16.xpose.msra.mxu0 %v337
        %341 = vmatprep.subr.bf16.mxu0 0
        %342 = vmatpush1.bf16.xpose.msra.mxu0 %v334
        %343 = vmatprep.subr.bf16.mxu0 0
        %344 = vmatpush1.bf16.xpose.msra.mxu0 %v331
        %345 = vmatprep.subr.bf16.mxu0 0
        %346 = vmatpush1.bf16.xpose.msra.mxu0 %v328
        %347 = vmatprep.subr.bf16.mxu0 0
        %348 = vmatpush1.bf16.xpose.msra.mxu0 %v325
        %349 = vmatprep.subr.bf16.mxu0 0
        %350 = vmatpush1.bf16.xpose.msra.mxu0 %v322
        %351 = vmatprep.subr.bf16.mxu0 0
        %352 = vmatpush1.bf16.xpose.msra.mxu0 %v319
        %353 = vmatprep.subr.bf16.mxu0 0
        %354 = vmatpush1.bf16.xpose.msra.mxu0 %v316
        %355 = vmatprep.subr.bf16.mxu0 0
        %356 = vmatpush2.bf16.xpose.msra.mxu0 0
        %357 = vmatprep.subr.bf16.mxu0 0
        %358 = vmatpush2.bf16.xpose.msra.mxu0 0
        %359 = vmatprep.subr.bf16.mxu0 0
        %360 = vmatpush2.bf16.xpose.msra.mxu0 0
        %361 = vmatprep.subr.bf16.mxu0 0
        %362 = vmatpush2.bf16.xpose.msra.mxu0 0
        %363 = vmatprep.subr.bf16.mxu0 0
        %364 = vmatpush2.bf16.xpose.msra.mxu0 0
        %365 = vmatprep.subr.bf16.mxu0 0
        %366 = vmatpush2.bf16.xpose.msra.mxu0 0
        %367 = vmatprep.subr.bf16.mxu0 0
        %368 = vmatpush2.bf16.xpose.msra.mxu0 0
        %369 = vmatprep.subr.bf16.mxu0 0
        %370 = vmatpush2.bf16.xpose.msra.mxu0 0
        %371 = vmatprep.mubr.bf16.mxu0 0
        %372 = vmatmul.mubr.bf16.gmra.mxu0 %v310
        %v373 = vpop.f32.mrf.mxu0
        %v374 = vadd.f32 %v281, %v373
        %v375 = vpop.f32.mrf.mxu0
        %v376 = vpop.f32.mrf.mxu0
        %v377 = vadd.f32 %v286, %v376
        %v378 = vpop.f32.mrf.mxu0
        %379 = vmatprep.mubr.bf16.mxu0 0
        %380 = vmatmul.mubr.bf16.gmra.mxu0 %v313
        %v381 = vpop.f32.mrf.mxu0
        %v382 = vadd.f32 %v291, %v381
        %v383 = vpop.f32.mrf.mxu0
        %v384 = vpop.f32.mrf.mxu0
        %v385 = vadd.f32 %v296, %v384
        %v386 = vpop.f32.mrf.mxu0
        %387 = vdwg.mxu0
        %v388 = vmax.f32 %v374, 0.0
        %v389 = vmax.f32 %v377, 0.0
        %v390 = vmax.f32 %v382, 0.0
        %v391 = vmax.f32 %v385, 0.0
        %v392 = vld [vmem:[%s3] sm:$0x1]
        %v393 = vpack.c.bf16 %v389, %v388
        %v394 = vpack.c.bf16 %v391, %v390
        %s395 = sld [smem:[#allocation2]]
        %v396 = vstv %s395
        %vm397 = vcmask 261120
        %v399 = vsel %vm397, %v392, 0
        %401 = vmatprep.subr.bf16.mxu0 0
        %402 = vmatpush1.bf16.msra.mxu0 0
        %403 = vmatprep.subr.bf16.mxu0 0
        %404 = vmatpush1.bf16.msra.mxu0 0
        %405 = vmatprep.subr.bf16.mxu0 0
        %406 = vmatpush1.bf16.msra.mxu0 0
        %407 = vmatprep.subr.bf16.mxu0 0
        %408 = vmatpush1.bf16.msra.mxu0 0
        %409 = vmatprep.subr.bf16.mxu0 0
        %410 = vmatpush1.bf16.msra.mxu0 0
        %411 = vmatprep.subr.bf16.mxu0 0
        %412 = vmatpush1.bf16.msra.mxu0 0
        %413 = vmatprep.subr.bf16.mxu0 0
        %414 = vmatpush1.bf16.msra.mxu0 %v394
        %415 = vmatprep.subr.bf16.mxu0 0
        %416 = vmatpush1.bf16.msra.mxu0 %v393
        %417 = vmatprep.subr.bf16.mxu0 0
        %418 = vmatpush2.bf16.msra.mxu0 0
        %419 = vmatprep.subr.bf16.mxu0 0
        %420 = vmatpush2.bf16.msra.mxu0 0
        %421 = vmatprep.subr.bf16.mxu0 0
        %422 = vmatpush2.bf16.msra.mxu0 0
        %423 = vmatprep.subr.bf16.mxu0 0
        %424 = vmatpush2.bf16.msra.mxu0 0
        %425 = vmatprep.subr.bf16.mxu0 0
        %426 = vmatpush2.bf16.msra.mxu0 0
        %427 = vmatprep.subr.bf16.mxu0 0
        %428 = vmatpush2.bf16.msra.mxu0 0
        %429 = vmatprep.subr.bf16.mxu0 0
        %430 = vmatpush2.bf16.msra.mxu0 0
        %431 = vmatprep.subr.bf16.mxu0 0
        %432 = vmatpush2.bf16.msra.mxu0 0
        %433 = vmatprep.mubr.bf16.mxu0 0
        %434 = vmatmul.mubr.bf16.gmra.mxu0 %v399
        %v435 = vpop.f32.mrf.mxu0
        %v436 = vadd.f32 %v396, %v435
        %v437 = vpop.f32.mrf.mxu0
        %v438 = vpop.f32.mrf.mxu0
        %v439 = vpop.f32.mrf.mxu0
        %440 = vdwg.mxu0
        %v441 = vxor.u32 %v436, 2147483648
        %v442 = vmul.f32 %v441, 1.442695
        %v443 = vpow.pop %v442
        %v444 = vadd.f32 %v443, 1.0
        %v445 = vrcp.pop %v444
        %v446 = vmul.f32 1.0, %v445
        %447 = vst [vmem:[%s230] sm:$0x1] %v446
        %s448 = sand.u32 %s138, 1
        %s449 = scalar_lea.sflag [#allocation4], %s448
        %s450 = sand.u32 %s138, 1
        %s451 = scalar_lea.vmem [#allocation3], %s450
        // Predicated region
        $region41: #{tpu_custom_call.1} parent=39 // pred_check
          %p452 = pneg %p148
        $region42: #{tpu_custom_call.1} parent=39 // pred_check_branch
          %454 = sbr.rel (%p452) target = $region44
        $region43: #{tpu_custom_call.1} parent=39 // pred_region
          %s456 = ssub.s32 16, 16
          %457 = vsyncadd %s449, %s456
          %s458 = smul.addr %s20, 16
          %s459 = scalar_lea.hbm %s5, %s458
          %s461 = sshll.u32 %s451, 4
          %s462 = int_to_ptr.vmem [resolvable:$true] %s461
          %464 = dma.vmem_to_hbm [thread:$0]  %s462, 16, %s459, %s449
        $region44: #{tpu_custom_call.1} parent=39 // pred_fallthru
          _
      $region40: #{tpu_custom_call.1} parent=5 // pred_fallthru
        _
      %p465 = scmp.le.s32.totalorder 2, %s15
      // Predicated region
      $region45: #{tpu_custom_call.1} parent=5 // pred_check
        %p466 = pneg %p465
      $region46: #{tpu_custom_call.1} parent=5 // pred_check_branch
        %468 = sbr.rel (%p466) target = $region48
      $region47: #{tpu_custom_call.1} parent=5 // pred_region
        %s469 = ssub.s32 %s15, 2
        // Predicated region
        $region49: #{tpu_custom_call.1} parent=47 // pred_check
          %p470 = pneg %p154
        $region50: #{tpu_custom_call.1} parent=47 // pred_check_branch
          %472 = sbr.rel (%p470) target = $region52
        $region51: #{tpu_custom_call.1} parent=47 // pred_region
          %s473 = sand.u32 %s139, 1
          %s474 = scalar_lea.sflag [#allocation4], %s473
          %s475 = sand.u32 %s139, 1
          %s476 = scalar_lea.vmem [#allocation3], %s475
          %477 = dma.done %s474, 16
        $region52: #{tpu_custom_call.1} parent=47 // pred_fallthru
          _
      $region48: #{tpu_custom_call.1} parent=5 // pred_fallthru
        _
    $region6: #{tpu_custom_call.1} parent=1 // loop_footer
      %s19 = sadd.s32 1, %s15
    $region7: #{tpu_custom_call.1} parent=1 // loop_footer_branch
      %14 = sbr.rel target = $region3
    $region8: #{tpu_custom_call.1} parent=1 // loop_exit
      _
    %478 = vsyncpa [#allocation4], 1
    %s479 = scalar_lea.sflag [#allocation4], 1
    %480 = vsyncpa %s479, 1

</llo_original>
